<compile_context>
chip_gen: v6e
topology: v6e:2x2x1
jax: 0.10.0
libtpu: 0.0.40
codegen_flags: <defaults>
</compile_context>

<pallas_src>
import functools

import jax
import jax.numpy as jnp
from jax import lax
from jax.experimental import pallas as pl
from jax.experimental.pallas import tpu as pltpu


def _attn_kernel(x_q_ref, vq_ref, k_ref, h_ref, bias_ref, w_c_ref, b_c_ref,
                 gamma_ref, o_ref, m_scr, l_scr, acc_scr,
                 *, apply_mask, bf16_softmax):
    """One (batch, q-tile, k-tile) grid step.

    x_q_ref : (1, C, TQ)  f32   residual stream (q tile)
    vq_ref  : (1, TQ, C8) bf16  value_conv(x) for the q tile
    k_ref   : (1, C8, TK) bf16  key_conv(x) for the k tile
    h_ref   : (1, C8, TK) bf16  query_conv(x) for the k tile (gets averaged)
    bias_ref: (1, TK)     f32   0 for valid keys, -1e30 for padded keys
    w_c_ref : (C, C8) bf16      b_c_ref: (C, 1) f32     gamma_ref: (1,) f32 SMEM
    scratch : m/l (TQ, 1) f32, acc (TQ, C8) f32 — online-softmax state
    """
    ki = pl.program_id(2)
    nk = pl.num_programs(2)

    @pl.when(ki == 0)
    def _init():
        m_scr[...] = jnp.full(m_scr.shape, -jnp.inf, dtype=m_scr.dtype)
        l_scr[...] = jnp.zeros(l_scr.shape, dtype=l_scr.dtype)
        acc_scr[...] = jnp.zeros(acc_scr.shape, dtype=acc_scr.dtype)

    vq = vq_ref[0]                                                   # (TQ, C8)
    kk = k_ref[0]                                                    # (C8, TK)
    hh = h_ref[0]                                                    # (C8, TK)

    # s[i, j] = <value(x)_i, key(x)_j>
    s = lax.dot_general(vq, kk,
                        dimension_numbers=(((1,), (0,)), ((), ())),
                        preferred_element_type=jnp.float32)          # (TQ, TK)
    if apply_mask:
        s = s + bias_ref[...]          # broadcast (1, TK): -1e30 on padded keys

    # Online softmax over the key axis.
    m_prev = m_scr[...]
    m_new = jnp.maximum(m_prev, jnp.max(s, axis=-1, keepdims=True))
    alpha = jnp.exp(m_prev - m_new)
    if bf16_softmax:
        # bf16 exp halves EUP/VPU traffic on v6e/v7x; keep the row sum in f32.
        p = jnp.exp((s - m_new).astype(jnp.bfloat16))                # (TQ, TK)
        row_sum = jnp.sum(p, axis=-1, keepdims=True, dtype=jnp.float32)
    else:
        p_f32 = jnp.exp(s - m_new)
        row_sum = jnp.sum(p_f32, axis=-1, keepdims=True)
        p = p_f32.astype(jnp.bfloat16)
    l_scr[...] = alpha * l_scr[...] + row_sum
    acc_scr[...] = alpha * acc_scr[...] + lax.dot_general(           # (TQ, C8)
        p, hh,
        dimension_numbers=(((1,), (1,)), ((), ())),
        preferred_element_type=jnp.float32)
    m_scr[...] = m_new

    @pl.when(ki == nk - 1)
    def _finalize():
        acc_n = acc_scr[...] * pl.reciprocal(l_scr[...], approx=True)  # (TQ, C8)
        out = lax.dot_general(                                         # (C, TQ)
            w_c_ref[...], acc_n.astype(jnp.bfloat16),
            dimension_numbers=(((1,), (1,)), ((), ())),
            preferred_element_type=jnp.float32) + b_c_ref[...]
        o_ref[0] = gamma_ref[0] * out + x_q_ref[0]


def _round_up(x, m):
    return (x + m - 1) // m * m


def _pick_block(requested, length):
    """Largest t <= requested with t == length, or t % 128 == 0 and length % t == 0."""
    t = min(requested, length)
    if t >= length:
        return length
    t -= t % 128
    while t >= 128:
        if length % t == 0:
            return t
        t -= 128
    return length


def _plan_tiles(L, block_q, block_k):
    """Return (tq, tk, padded_L)."""
    if L <= 128:
        return L, L, L                         # single tile, no padding needed
    if L % 128 == 0:
        return _pick_block(block_q, L), _pick_block(block_k, L), L
    # Ragged: pad to a multiple of 128; padded keys are masked in-kernel,
    # padded query rows are sliced off in the wrapper.
    Lp = _round_up(L, 128)
    return _pick_block(block_q, Lp), _pick_block(block_k, Lp), Lp


@functools.partial(jax.jit, static_argnames=("block_q", "block_k", "softmax_bf16"))
def attention_layer(x_ncl, params, *, block_q=None, block_k=None, softmax_bf16=None):
    """SAGAN attention forward. x_ncl: (B, C, L) float32 (PyTorch NCL layout)."""
    B, C, L = x_ncl.shape
    assert C % 8 == 0 and C >= 8, "in_dim must be a positive multiple of 8"
    C8 = C // 8

    # Generation-tuned defaults (v6e/v7x: bigger tiles + bf16 softmax probs).
    kind = jax.devices()[0].device_kind.lower()
    newer_gen = ("v6" in kind) or ("v7" in kind)
    if block_q is None:
        block_q = 512 if newer_gen else 256
    if block_k is None:
        block_k = 512 if newer_gen else 256
    if softmax_bf16 is None:
        softmax_bf16 = newer_gen

    tq, tk, Lp = _plan_tiles(L, block_q, block_k)
    nq, nk = Lp // tq, Lp // tk
    needs_mask = Lp != L

    # ---- Hoisted 1x1-conv projections (computed once, streamed as bf16) ----
    x_pad = x_ncl if Lp == L else jnp.pad(x_ncl, ((0, 0), (0, 0), (0, Lp - L)))
    xb = x_pad.astype(jnp.bfloat16)
    w_v = params["wv"].reshape(C8, C).astype(jnp.bfloat16)
    w_k = params["wk"].reshape(C8, C).astype(jnp.bfloat16)
    w_q = params["wq"].reshape(C8, C).astype(jnp.bfloat16)
    w_c = params["wc"].reshape(C, C8).astype(jnp.bfloat16)
    b_c = params["bc"].reshape(C, 1).astype(jnp.float32)
    gamma = params["gamma"].reshape(1).astype(jnp.float32)

    # value_conv(x) in (B, L, C8) layout -> no in-kernel transpose.
    vq = (jnp.einsum("oc,bcl->blo", w_v, xb, preferred_element_type=jnp.float32)
          + params["bv"].astype(jnp.float32)[None, None, :]).astype(jnp.bfloat16)
    # key_conv(x) / query_conv(x) channel-major for the k-side stream.
    kk = (jnp.einsum("oc,bcl->bol", w_k, xb, preferred_element_type=jnp.float32)
          + params["bk"].astype(jnp.float32)[None, :, None]).astype(jnp.bfloat16)
    hh = (jnp.einsum("oc,bcl->bol", w_q, xb, preferred_element_type=jnp.float32)
          + params["bq"].astype(jnp.float32)[None, :, None]).astype(jnp.bfloat16)

    # 0 for valid keys, -1e30 for padded keys (finite to keep exp well-defined).
    key_bias = jnp.where(jnp.arange(Lp)[None, :] < L, 0.0, -1e30).astype(jnp.float32)

    # ---- VMEM budget derived from the actual tile footprint ----
    f32b, bf16b = 4, 2
    stream_bytes = 2 * (                       # double-buffered pipeline copies
        C * tq * f32b                          # x (residual, q tile)
        + tq * C8 * bf16b                      # value projection (q tile)
        + 2 * C8 * tk * bf16b                  # key + query projections (k tile)
        + tk * f32b                            # key mask bias
        + C * C8 * bf16b + C * f32b            # output-conv weights / bias
        + C * tq * f32b                        # output tile
    )
    scratch_bytes = 2 * tq * f32b + tq * C8 * f32b
    interm_bytes = 3 * tq * tk * f32b          # s / p / exp temporaries
    vmem_limit = int(min(64 * 1024 * 1024,
                         max(32 * 1024 * 1024,
                             2 * (stream_bytes + scratch_bytes + interm_bytes)
                             + 4 * 1024 * 1024)))

    kernel = functools.partial(_attn_kernel,
                               apply_mask=needs_mask,
                               bf16_softmax=bool(softmax_bf16))

    def _fixed(shape):
        return pl.BlockSpec(shape, lambda b, qi, ki: (0,) * len(shape))

    out_padded = pl.pallas_call(
        kernel,
        out_shape=jax.ShapeDtypeStruct((B, C, Lp), jnp.float32),
        grid=(B, nq, nk),
        in_specs=[
            pl.BlockSpec((1, C, tq), lambda b, qi, ki: (b, 0, qi)),   # x (residual)
            pl.BlockSpec((1, tq, C8), lambda b, qi, ki: (b, qi, 0)),  # value proj (q)
            pl.BlockSpec((1, C8, tk), lambda b, qi, ki: (b, 0, ki)),  # key proj (k)
            pl.BlockSpec((1, C8, tk), lambda b, qi, ki: (b, 0, ki)),  # query proj (k)
            pl.BlockSpec((1, tk), lambda b, qi, ki: (0, ki)),         # key mask bias
            _fixed((C, C8)), _fixed((C, 1)),                          # output conv
            pl.BlockSpec(memory_space=pltpu.MemorySpace.SMEM),        # gamma scalar
        ],
        out_specs=pl.BlockSpec((1, C, tq), lambda b, qi, ki: (b, 0, qi)),
        scratch_shapes=[
            pltpu.VMEM((tq, 1), jnp.float32),     # running row max
            pltpu.VMEM((tq, 1), jnp.float32),     # running row sum
            pltpu.VMEM((tq, C8), jnp.float32),    # running weighted sum
        ],
        compiler_params=pltpu.CompilerParams(
            dimension_semantics=("parallel", "parallel", "arbitrary"),
            vmem_limit_bytes=vmem_limit,
        ),
    )(x_pad, vq, kk, hh, key_bias, w_c, b_c, gamma)

    return out_padded if Lp == L else out_padded[:, :, :L]


def _reference(x_ncl, params):
    """Pure-JAX (f32) reference mirroring the PyTorch forward."""
    conv1 = lambda x, w, b: jnp.einsum(
        "oc,bcl->bol", w.reshape(-1, x.shape[1]), x) + b[None, :, None]
    fxi = conv1(x_ncl, params["wv"], params["bv"])          # (B, C8, L)
    gxj = conv1(x_ncl, params["wk"], params["bk"])          # (B, C8, L)
    sij = jnp.einsum("bci,bcj->bij", fxi, gxj)              # (B, L, L)
    betas = jax.nn.softmax(sij, axis=-1)
    betas = jnp.transpose(betas, (0, 2, 1))
    hidden = conv1(x_ncl, params["wq"], params["bq"])       # (B, C8, L)
    out = jnp.einsum("bcj,bji->bci", hidden, betas)         # (B, C8, L)
    out = conv1(out, params["wc"], params["bc"])            # (B, C, L)
    return params["gamma"].reshape(()) * out + x_ncl


def _init_params(key, in_dim):
    c8 = in_dim // 8
    ks = jax.random.split(key, 8)
    scale = 0.1
    return {
        "wv": scale * jax.random.normal(ks[0], (c8, in_dim, 1), jnp.float32),
        "bv": scale * jax.random.normal(ks[1], (c8,), jnp.float32),
        "wk": scale * jax.random.normal(ks[2], (c8, in_dim, 1), jnp.float32),
        "bk": scale * jax.random.normal(ks[3], (c8,), jnp.float32),
        "wq": scale * jax.random.normal(ks[4], (c8, in_dim, 1), jnp.float32),
        "bq": scale * jax.random.normal(ks[5], (c8,), jnp.float32),
        "wc": scale * jax.random.normal(ks[6], (in_dim, c8, 1), jnp.float32),
        "bc": scale * jax.random.normal(ks[7], (in_dim,), jnp.float32),
        # PyTorch initializes gamma to zero; use a non-zero value so the
        # attention branch is actually exercised numerically.
        "gamma": jnp.asarray([0.5], jnp.float32),
    }


if __name__ == "__main__":
    key = jax.random.PRNGKey(0)
    kx, kp, kx2, kx3 = jax.random.split(key, 4)

    # Small demo shapes consistent with the module (Conv1d NCL layout).
    B, C, L = 2, 32, 16
    params = _init_params(kp, C)
    x = jax.random.normal(kx, (B, C, L), jnp.float32)

    out = jax.block_until_ready(attention_layer(x, params))
    ref = _reference(x, params)
    assert out.shape == (B, C, L)
    # bf16 MXU operands + approx reciprocal (+ bf16 softmax on v6e/v7x)
    # => loosen tolerance vs the f32 reference.
    assert jnp.allclose(out, ref, atol=2e-2, rtol=2e-2), "mismatch (small)"

    # Tiled flash / online-softmax path (multiple q- and k-tiles).
    L2 = 256
    x2 = jax.random.normal(kx2, (B, C, L2), jnp.float32)
    out2 = jax.block_until_ready(
        attention_layer(x2, params, block_q=128, block_k=128))
    ref2 = _reference(x2, params)
    assert out2.shape == (B, C, L2)
    assert jnp.allclose(out2, ref2, atol=2e-2, rtol=2e-2), "mismatch (tiled)"

    # Ragged L -> padded + masked key tiles (no full-length fallback).
    L3 = 200
    x3 = jax.random.normal(kx3, (1, C, L3), jnp.float32)
    out3 = jax.block_until_ready(
        attention_layer(x3, params, block_q=128, block_k=128))
    ref3 = _reference(x3, params)
    assert out3.shape == (1, C, L3)
    assert jnp.allclose(out3, ref3, atol=2e-2, rtol=2e-2), "mismatch (ragged)"

    print("KERNEL_OK")
</pallas_src>

<mosaic_0001>
module attributes {stable_mosaic.version = 11 : i64} {
  func.func @_attn_kernel(%arg0: i32, %arg1: i32, %arg2: i32, %arg3: memref<1x32x16xf32, #tpu.memory_space<vmem>>, %arg4: memref<1x16x4xbf16, #tpu.memory_space<vmem>>, %arg5: memref<1x4x16xbf16, #tpu.memory_space<vmem>>, %arg6: memref<1x4x16xbf16, #tpu.memory_space<vmem>>, %arg7: memref<1x16xf32, #tpu.memory_space<vmem>>, %arg8: memref<32x4xbf16, #tpu.memory_space<vmem>>, %arg9: memref<32x1xf32, #tpu.memory_space<vmem>>, %arg10: memref<1xf32, #tpu.memory_space<smem>>, %arg11: memref<1x32x16xf32, #tpu.memory_space<vmem>>, %arg12: memref<16x1xf32, #tpu.memory_space<vmem>>, %arg13: memref<16x1xf32, #tpu.memory_space<vmem>>, %arg14: memref<16x4xf32, #tpu.memory_space<vmem>>) attributes {dimension_semantics = [#tpu.dimension_semantics<parallel>, #tpu.dimension_semantics<parallel>, #tpu.dimension_semantics<arbitrary>], iteration_bounds = array<i64: 2, 1, 1>, scalar_prefetch = 0 : i64, scratch_operands = 3 : i64, tpu.core_type = #tpu.core_type<tc>, window_params = [{transform_indices = @transform_0, window_bounds = array<i64: 1, 32, 16>}, {transform_indices = @transform_1, window_bounds = array<i64: 1, 16, 4>}, {transform_indices = @transform_2, window_bounds = array<i64: 1, 4, 16>}, {transform_indices = @transform_3, window_bounds = array<i64: 1, 4, 16>}, {transform_indices = @transform_4, window_bounds = array<i64: 1, 16>}, {pipeline_mode = #tpu.pipeline_mode<synchronous>, transform_indices = @transform_5, window_bounds = array<i64: 32, 4>}, {pipeline_mode = #tpu.pipeline_mode<synchronous>, transform_indices = @transform_6, window_bounds = array<i64: 32, 1>}, {transform_indices = @transform_7, window_bounds = array<i64: 1>}, {transform_indices = @transform_8, window_bounds = array<i64: 1, 32, 16>}]} {
    %c0_i32 = arith.constant 0 : i32
    %0 = arith.cmpi eq, %arg2, %c0_i32 : i32
    %1 = arith.extui %0 : i1 to i32
    %c0_i32_0 = arith.constant 0 : i32
    %2 = arith.cmpi ne, %1, %c0_i32_0 : i32
    scf.if %2 {
      %cst_26 = arith.constant 0xFF800000 : f32
      %36 = vector.broadcast %cst_26 : f32 to vector<16x1xf32>
      %c0_27 = arith.constant 0 : index
      %c0_28 = arith.constant 0 : index
      %37 = vector.load %arg12[%c0_27, %c0_28] : memref<16x1xf32, #tpu.memory_space<vmem>>, vector<16x1xf32>
      tpu.vector_store %arg12[%c0_27, %c0_28], %36 {strides = array<i32>} : memref<16x1xf32, #tpu.memory_space<vmem>>, vector<16x1xf32>,
      %cst_29 = arith.constant 0.000000e+00 : f32
      %38 = vector.broadcast %cst_29 : f32 to vector<16x1xf32>
      %c0_30 = arith.constant 0 : index
      %c0_31 = arith.constant 0 : index
      %39 = vector.load %arg13[%c0_30, %c0_31] : memref<16x1xf32, #tpu.memory_space<vmem>>, vector<16x1xf32>
      tpu.vector_store %arg13[%c0_30, %c0_31], %38 {strides = array<i32>} : memref<16x1xf32, #tpu.memory_space<vmem>>, vector<16x1xf32>,
      %cst_32 = arith.constant 0.000000e+00 : f32
      %40 = vector.broadcast %cst_32 : f32 to vector<16x4xf32>
      %c0_33 = arith.constant 0 : index
      %c0_34 = arith.constant 0 : index
      %41 = vector.load %arg14[%c0_33, %c0_34] : memref<16x4xf32, #tpu.memory_space<vmem>>, vector<16x4xf32>
      tpu.vector_store %arg14[%c0_33, %c0_34], %40 {strides = array<i32>} : memref<16x4xf32, #tpu.memory_space<vmem>>, vector<16x4xf32>,
    } else {
    }
    %c0 = arith.constant 0 : index
    %c0_1 = arith.constant 0 : index
    %c0_2 = arith.constant 0 : index
    %3 = vector.load %arg4[%c0, %c0_1, %c0_2] : memref<1x16x4xbf16, #tpu.memory_space<vmem>>, vector<1x16x4xbf16>
    %4 = vector.shape_cast %3 : vector<1x16x4xbf16> to vector<16x4xbf16>
    %c0_3 = arith.constant 0 : index
    %c0_4 = arith.constant 0 : index
    %c0_5 = arith.constant 0 : index
    %5 = vector.load %arg5[%c0_3, %c0_4, %c0_5] : memref<1x4x16xbf16, #tpu.memory_space<vmem>>, vector<1x4x16xbf16>
    %6 = vector.shape_cast %5 : vector<1x4x16xbf16> to vector<4x16xbf16>
    %c0_6 = arith.constant 0 : index
    %c0_7 = arith.constant 0 : index
    %c0_8 = arith.constant 0 : index
    %7 = vector.load %arg6[%c0_6, %c0_7, %c0_8] : memref<1x4x16xbf16, #tpu.memory_space<vmem>>, vector<1x4x16xbf16>
    %8 = vector.shape_cast %7 : vector<1x4x16xbf16> to vector<4x16xbf16>
    %cst = arith.constant dense<0.000000e+00> : vector<16x16xf32>
    %9 = tpu.matmul %4, %6, %cst {dimension_numbers = #tpu.dot_dimension_numbers<[1], [0], [0], [1], [0, 0, 1, 1], [], []>} : vector<16x4xbf16>, vector<4x16xbf16>, vector<16x16xf32> -> vector<16x16xf32>
    %c0_9 = arith.constant 0 : index
    %c0_10 = arith.constant 0 : index
    %10 = vector.load %arg12[%c0_9, %c0_10] : memref<16x1xf32, #tpu.memory_space<vmem>>, vector<16x1xf32>
    %cst_11 = arith.constant dense<0xFF800000> : vector<16xf32>
    %11 = vector.multi_reduction <maximumf>, %9, %cst_11 [1] : vector<16x16xf32> to vector<16xf32>
    %12 = vector.shape_cast %11 : vector<16xf32> to vector<16x1xf32>
    %13 = arith.maximumf %10, %12 : vector<16x1xf32>
    %14 = arith.subf %10, %13 : vector<16x1xf32>
    %15 = math.exp %14 : vector<16x1xf32>
    %16 = vector.broadcast %13 : vector<16x1xf32> to vector<16x16xf32>
    %17 = arith.subf %9, %16 : vector<16x16xf32>
    %18 = math.exp %17 : vector<16x16xf32>
    %cst_12 = arith.constant dense<0.000000e+00> : vector<16xf32>
    %19 = vector.multi_reduction <add>, %18, %cst_12 [1] : vector<16x16xf32> to vector<16xf32>
    %20 = vector.shape_cast %19 : vector<16xf32> to vector<16x1xf32>
    %21 = arith.truncf %18 : vector<16x16xf32> to vector<16x16xbf16>
    %c0_13 = arith.constant 0 : index
    %c0_14 = arith.constant 0 : index
    %22 = vector.load %arg13[%c0_13, %c0_14] : memref<16x1xf32, #tpu.memory_space<vmem>>, vector<16x1xf32>
    %23 = arith.mulf %15, %22 : vector<16x1xf32>
    %24 = arith.addf %23, %20 : vector<16x1xf32>
    %c0_15 = arith.constant 0 : index
    %c0_16 = arith.constant 0 : index
    %25 = vector.load %arg13[%c0_15, %c0_16] : memref<16x1xf32, #tpu.memory_space<vmem>>, vector<16x1xf32>
    tpu.vector_store %arg13[%c0_15, %c0_16], %24 {strides = array<i32>} : memref<16x1xf32, #tpu.memory_space<vmem>>, vector<16x1xf32>,
    %c0_17 = arith.constant 0 : index
    %c0_18 = arith.constant 0 : index
    %26 = vector.load %arg14[%c0_17, %c0_18] : memref<16x4xf32, #tpu.memory_space<vmem>>, vector<16x4xf32>
    %27 = vector.broadcast %15 : vector<16x1xf32> to vector<16x4xf32>
    %28 = arith.mulf %27, %26 : vector<16x4xf32>
    %cst_19 = arith.constant dense<0.000000e+00> : vector<16x4xf32>
    %29 = tpu.matmul %21, %8, %cst_19 {dimension_numbers = #tpu.dot_dimension_numbers<[1], [1], [0], [0], [0, 0, 1, 0], [], []>} : vector<16x16xbf16>, vector<4x16xbf16>, vector<16x4xf32> -> vector<16x4xf32>
    %30 = arith.addf %28, %29 : vector<16x4xf32>
    %c0_20 = arith.constant 0 : index
    %c0_21 = arith.constant 0 : index
    %31 = vector.load %arg14[%c0_20, %c0_21] : memref<16x4xf32, #tpu.memory_space<vmem>>, vector<16x4xf32>
    tpu.vector_store %arg14[%c0_20, %c0_21], %30 {strides = array<i32>} : memref<16x4xf32, #tpu.memory_space<vmem>>, vector<16x4xf32>,
    %c0_22 = arith.constant 0 : index
    %c0_23 = arith.constant 0 : index
    %32 = vector.load %arg12[%c0_22, %c0_23] : memref<16x1xf32, #tpu.memory_space<vmem>>, vector<16x1xf32>
    tpu.vector_store %arg12[%c0_22, %c0_23], %13 {strides = array<i32>} : memref<16x1xf32, #tpu.memory_space<vmem>>, vector<16x1xf32>,
    %c0_i32_24 = arith.constant 0 : i32
    %33 = arith.cmpi eq, %arg2, %c0_i32_24 : i32
    %34 = arith.extui %33 : i1 to i32
    %c0_i32_25 = arith.constant 0 : i32
    %35 = arith.cmpi ne, %34, %c0_i32_25 : i32
    scf.if %35 {
      %c0_26 = arith.constant 0 : index
      %c0_27 = arith.constant 0 : index
      %36 = vector.load %arg14[%c0_26, %c0_27] : memref<16x4xf32, #tpu.memory_space<vmem>>, vector<16x4xf32>
      %c0_28 = arith.constant 0 : index
      %c0_29 = arith.constant 0 : index
      %37 = vector.load %arg13[%c0_28, %c0_29] : memref<16x1xf32, #tpu.memory_space<vmem>>, vector<16x1xf32>
      %38 = tpu.reciprocal %37 {approx = true} : vector<16x1xf32> -> vector<16x1xf32>
      %39 = vector.broadcast %38 : vector<16x1xf32> to vector<16x4xf32>
      %40 = arith.mulf %36, %39 : vector<16x4xf32>
      %c0_30 = arith.constant 0 : index
      %c0_31 = arith.constant 0 : index
      %41 = vector.load %arg8[%c0_30, %c0_31] : memref<32x4xbf16, #tpu.memory_space<vmem>>, vector<32x4xbf16>
      %42 = arith.truncf %40 : vector<16x4xf32> to vector<16x4xbf16>
      %cst_32 = arith.constant dense<0.000000e+00> : vector<32x16xf32>
      %43 = tpu.matmul %41, %42, %cst_32 {dimension_numbers = #tpu.dot_dimension_numbers<[1], [1], [0], [0], [0, 0, 1, 0], [], []>} : vector<32x4xbf16>, vector<16x4xbf16>, vector<32x16xf32> -> vector<32x16xf32>
      %c0_33 = arith.constant 0 : index
      %c0_34 = arith.constant 0 : index
      %44 = vector.load %arg9[%c0_33, %c0_34] : memref<32x1xf32, #tpu.memory_space<vmem>>, vector<32x1xf32>
      %45 = vector.broadcast %44 : vector<32x1xf32> to vector<32x16xf32>
      %46 = arith.addf %43, %45 : vector<32x16xf32>
      %c0_35 = arith.constant 0 : index
      %47 = memref.load %arg10[%c0_35] : memref<1xf32, #tpu.memory_space<smem>>
      %48 = vector.broadcast %47 : f32 to vector<32x16xf32>
      %49 = arith.mulf %48, %46 : vector<32x16xf32>
      %c0_36 = arith.constant 0 : index
      %c0_37 = arith.constant 0 : index
      %c0_38 = arith.constant 0 : index
      %50 = vector.load %arg3[%c0_36, %c0_37, %c0_38] : memref<1x32x16xf32, #tpu.memory_space<vmem>>, vector<1x32x16xf32>
      %51 = vector.shape_cast %50 : vector<1x32x16xf32> to vector<32x16xf32>
      %52 = arith.addf %49, %51 : vector<32x16xf32>
      %c0_39 = arith.constant 0 : index
      %c0_40 = arith.constant 0 : index
      %c0_41 = arith.constant 0 : index
      %53 = vector.load %arg11[%c0_39, %c0_40, %c0_41] : memref<1x32x16xf32, #tpu.memory_space<vmem>>, vector<1x32x16xf32>
      %54 = vector.shape_cast %53 : vector<1x32x16xf32> to vector<32x16xf32>
      %55 = vector.shape_cast %52 : vector<32x16xf32> to vector<1x32x16xf32>
      tpu.vector_store %arg11[%c0_39, %c0_40, %c0_41], %55 {strides = array<i32>} : memref<1x32x16xf32, #tpu.memory_space<vmem>>, vector<1x32x16xf32>,
    } else {
    }
    return
  }
  func.func @transform_0(%arg0: i32, %arg1: i32, %arg2: i32) -> (i32, i32, i32) {
    %c0_i32 = arith.constant 0 : i32
    %c0_i32_0 = arith.constant 0 : i32
    return %arg0, %c0_i32, %arg1 : i32, i32, i32
  }
  func.func @transform_1(%arg0: i32, %arg1: i32, %arg2: i32) -> (i32, i32, i32) {
    %c0_i32 = arith.constant 0 : i32
    %c0_i32_0 = arith.constant 0 : i32
    return %arg0, %arg1, %c0_i32 : i32, i32, i32
  }
  func.func @transform_2(%arg0: i32, %arg1: i32, %arg2: i32) -> (i32, i32, i32) {
    %c0_i32 = arith.constant 0 : i32
    %c0_i32_0 = arith.constant 0 : i32
    return %arg0, %c0_i32, %arg2 : i32, i32, i32
  }
  func.func @transform_3(%arg0: i32, %arg1: i32, %arg2: i32) -> (i32, i32, i32) {
    %c0_i32 = arith.constant 0 : i32
    %c0_i32_0 = arith.constant 0 : i32
    return %arg0, %c0_i32, %arg2 : i32, i32, i32
  }
  func.func @transform_4(%arg0: i32, %arg1: i32, %arg2: i32) -> (i32, i32) {
    %c0_i32 = arith.constant 0 : i32
    %c0_i32_0 = arith.constant 0 : i32
    return %c0_i32, %arg2 : i32, i32
  }
  func.func @transform_5(%arg0: i32, %arg1: i32, %arg2: i32) -> (i32, i32) {
    %c0_i32 = arith.constant 0 : i32
    %c0_i32_0 = arith.constant 0 : i32
    %c0_i32_1 = arith.constant 0 : i32
    return %c0_i32, %c0_i32_0 : i32, i32
  }
  func.func @transform_6(%arg0: i32, %arg1: i32, %arg2: i32) -> (i32, i32) {
    %c0_i32 = arith.constant 0 : i32
    %c0_i32_0 = arith.constant 0 : i32
    %c0_i32_1 = arith.constant 0 : i32
    return %c0_i32, %c0_i32_0 : i32, i32
  }
  func.func @transform_7(%arg0: i32, %arg1: i32, %arg2: i32) -> i32 {
    %c0_i32 = arith.constant 0 : i32
    %c0_i32_0 = arith.constant 0 : i32
    return %c0_i32 : i32
  }
  func.func @transform_8(%arg0: i32, %arg1: i32, %arg2: i32) -> (i32, i32, i32) {
    %c0_i32 = arith.constant 0 : i32
    %c0_i32_0 = arith.constant 0 : i32
    return %arg0, %c0_i32, %arg1 : i32, i32, i32
  }
}

</mosaic_0001>

<llo_original>
// kernel: attention_layer.1
$region0: #{attention_layer.1}
  #allocation0 [shape = 'u32[]', space=smem, size = 0x4, offset = 0x4, fixed_abs, tag = 'smem constant byte address 0x4 - core index']
  #allocation1 [shape = 'u32[144,128]{1,0:T(1,128)}', space=vmem, size = 0x12000, scoped, tag = 'internal scratch']
  #allocation2 [shape = 'f32[16,1]{1,0:T(8,128)}', space=vmem, size = 0x2000, scoped, tag = 'scratch operand']
  #allocation3 [shape = 'f32[16,1]{1,0:T(8,128)}', space=vmem, size = 0x2000, scoped, tag = 'scratch operand']
  #allocation4 [shape = 'f32[16,4]{1,0:T(8,128)}', space=vmem, size = 0x2000, scoped, tag = 'scratch operand']
  #allocation5 [shape = 'f32[1]{0:T(128)S(6)}', space=smem, size = 0x200, scoped, tag = 'scoped memory for attention_layer.1']
  %s0 = inlined_call_operand.vmem [shape: f32[2,32,16], index: 0, kind: input, shape index: {}]
  %s1 = inlined_call_operand.vmem [shape: bf16[2,16,4], index: 1, kind: input, shape index: {}]
  %s2 = inlined_call_operand.vmem [shape: bf16[2,4,16], index: 2, kind: input, shape index: {}]
  %s3 = inlined_call_operand.vmem [shape: bf16[2,4,16], index: 3, kind: input, shape index: {}]
  %s4 = inlined_call_operand.vmem [shape: f32[1,16], index: 4, kind: input, shape index: {}]
  %s5 = inlined_call_operand.vmem [shape: bf16[32,4], index: 5, kind: input, shape index: {}]
  %s6 = inlined_call_operand.vmem [shape: f32[32,1], index: 6, kind: input, shape index: {}]
  %s7 = inlined_call_operand.<no memory space> [shape: f32[1], index: 7, kind: input, shape index: {}]
  %s8 = inlined_call_operand.vmem [shape: f32[2,32,16], index: 8, kind: output, shape index: {}]
  %s9 = sld [smem:[#allocation0]]
  $region73: #{attention_layer.1} parent=0
    _
  %s11 = ssub.s32 1, %s9
  %s12 = scalar_select 0, %s11, %s9
  %13 = sst [smem:[#allocation5]] %s7
  loop: start=0, step=1, limit=4
  $region2: #{attention_layer.1} parent=0 // loop_pre_header
    _
  $region3: #{attention_layer.1} parent=0 // loop_header
    %s15 = sphi 0, %s19
    %p16 = scmp.ge.s32.totalorder %s15, 4
    %s22 = sphi 0, %s41
    %s23 = sphi 0, %s37
    %s24 = sphi 0, %s33
    %s25 = sphi 0, %s22
    %s26 = sphi 0, %s23
    %s27 = sphi 0, %s24
    %s28 = sphi 0, %s25
    %s29 = sphi 0, %s26
    %s30 = sphi 0, %s27
    %s46 = sphi 0, %s48
    %s49 = sphi 0, %s46
    %s50 = sphi 0, %s49
    %s66 = sphi 0, %s50
    %s74 = sphi 0, %s76
    %s77 = sphi 0, %s74
    %s78 = sphi 0, %s77
    %s94 = sphi 0, %s78
    %s102 = sphi 0, %s104
    %s105 = sphi 0, %s102
    %s106 = sphi 0, %s105
    %s122 = sphi 0, %s106
    %s130 = sphi 0, %s132
    %s133 = sphi 0, %s130
    %s134 = sphi 0, %s133
    %s150 = sphi 0, %s134
    %s156 = sphi 0, %s158
    %s159 = sphi 0, %s156
    %s160 = sphi 0, %s159
    %s176 = sphi 0, %s160
    %s180 = sphi 0, %s180
    %s182 = sphi 0, %s180
    %s183 = sphi 0, %s182
    %s197 = sphi 0, %s183
    %s201 = sphi 0, %s201
    %s203 = sphi 0, %s201
    %s204 = sphi 0, %s203
    %s218 = sphi 0, %s204
    %s222 = sphi 0, %s222
    %s224 = sphi 0, %s222
    %s225 = sphi 0, %s224
    %s239 = sphi 0, %s225
    %s247 = sphi 0, %s249
    %s250 = sphi 0, %s247
    %s251 = sphi 0, %s250
    %s267 = sphi 0, %s251
  $region4: #{attention_layer.1} parent=0 // loop_header_branch
    %18 = sbr.rel (%p16) target = $region8
  $region5: #{attention_layer.1} parent=0 // loop_body
    %s20 = ssub.s32 %s15, 1
    %s21 = ssub.s32 %s15, 2
    %s31 = sadd.s32 1, %s24
    %p32 = scmp.ge.s32.totalorder %s31, 1
    %s33 = scalar_select %p32, 0, %s31
    %s34 = sadd.s32 1, %s23
    %s35 = scalar_select %p32, %s34, %s23
    %p36 = scmp.ge.s32.totalorder %s35, 1
    %s37 = scalar_select %p36, 0, %s35
    %s38 = sadd.s32 1, %s22
    %s39 = scalar_select %p36, %s38, %s22
    %p40 = scmp.ge.s32.totalorder %s39, 2
    %s41 = scalar_select %p40, 0, %s39
    %s42 = ssub.s32 %s22, %s41
    %s43 = ssub.s32 %s23, %s37
    %s44 = sor.u32 %s42, %s43
    %p45 = scmp.eq.s32.totalorder %s44, 0
    %s47 = sadd.s32 %s46, 1
    %s48 = scalar_select %p45, %s46, %s47
    %p51 = pneg %p45
    %p52 = scmp.eq.s32.totalorder %s15, 1
    %p53 = por %p51, %p52
    %p54 = scmp.ne.s32.totalorder %s46, %s49
    %p55 = scmp.eq.s32.totalorder %s15, 0
    %p56 = por %p54, %p55
    %p57 = scmp.ne.s32.totalorder %s46, %s49
    %p58 = scmp.eq.s32.totalorder %s20, 1
    %p59 = por %p57, %p58
    %p60 = scmp.ne.s32.totalorder %s49, %s50
    %p61 = scmp.eq.s32.totalorder %s20, 0
    %p62 = por %p60, %p61
    %p63 = scmp.ne.s32.totalorder %s49, %s50
    %p64 = scmp.eq.s32.totalorder %s21, 1
    %p65 = por %p63, %p64
    %p67 = scmp.ne.s32.totalorder %s50, %s66
    %p68 = scmp.eq.s32.totalorder %s21, 0
    %p69 = por %p67, %p68
    %s70 = ssub.s32 %s22, %s41
    %s71 = ssub.s32 %s23, %s37
    %s72 = sor.u32 %s70, %s71
    %p73 = scmp.eq.s32.totalorder %s72, 0
    %s75 = sadd.s32 %s74, 1
    %s76 = scalar_select %p73, %s74, %s75
    %p79 = pneg %p73
    %p80 = scmp.eq.s32.totalorder %s15, 1
    %p81 = por %p79, %p80
    %p82 = scmp.ne.s32.totalorder %s74, %s77
    %p83 = scmp.eq.s32.totalorder %s15, 0
    %p84 = por %p82, %p83
    %p85 = scmp.ne.s32.totalorder %s74, %s77
    %p86 = scmp.eq.s32.totalorder %s20, 1
    %p87 = por %p85, %p86
    %p88 = scmp.ne.s32.totalorder %s77, %s78
    %p89 = scmp.eq.s32.totalorder %s20, 0
    %p90 = por %p88, %p89
    %p91 = scmp.ne.s32.totalorder %s77, %s78
    %p92 = scmp.eq.s32.totalorder %s21, 1
    %p93 = por %p91, %p92
    %p95 = scmp.ne.s32.totalorder %s78, %s94
    %p96 = scmp.eq.s32.totalorder %s21, 0
    %p97 = por %p95, %p96
    %s98 = ssub.s32 %s22, %s41
    %s99 = ssub.s32 %s24, %s33
    %s100 = sor.u32 %s98, %s99
    %p101 = scmp.eq.s32.totalorder %s100, 0
    %s103 = sadd.s32 %s102, 1
    %s104 = scalar_select %p101, %s102, %s103
    %p107 = pneg %p101
    %p108 = scmp.eq.s32.totalorder %s15, 1
    %p109 = por %p107, %p108
    %p110 = scmp.ne.s32.totalorder %s102, %s105
    %p111 = scmp.eq.s32.totalorder %s15, 0
    %p112 = por %p110, %p111
    %p113 = scmp.ne.s32.totalorder %s102, %s105
    %p114 = scmp.eq.s32.totalorder %s20, 1
    %p115 = por %p113, %p114
    %p116 = scmp.ne.s32.totalorder %s105, %s106
    %p117 = scmp.eq.s32.totalorder %s20, 0
    %p118 = por %p116, %p117
    %p119 = scmp.ne.s32.totalorder %s105, %s106
    %p120 = scmp.eq.s32.totalorder %s21, 1
    %p121 = por %p119, %p120
    %p123 = scmp.ne.s32.totalorder %s106, %s122
    %p124 = scmp.eq.s32.totalorder %s21, 0
    %p125 = por %p123, %p124
    %s126 = ssub.s32 %s22, %s41
    %s127 = ssub.s32 %s24, %s33
    %s128 = sor.u32 %s126, %s127
    %p129 = scmp.eq.s32.totalorder %s128, 0
    %s131 = sadd.s32 %s130, 1
    %s132 = scalar_select %p129, %s130, %s131
    %p135 = pneg %p129
    %p136 = scmp.eq.s32.totalorder %s15, 1
    %p137 = por %p135, %p136
    %p138 = scmp.ne.s32.totalorder %s130, %s133
    %p139 = scmp.eq.s32.totalorder %s15, 0
    %p140 = por %p138, %p139
    %p141 = scmp.ne.s32.totalorder %s130, %s133
    %p142 = scmp.eq.s32.totalorder %s20, 1
    %p143 = por %p141, %p142
    %p144 = scmp.ne.s32.totalorder %s133, %s134
    %p145 = scmp.eq.s32.totalorder %s20, 0
    %p146 = por %p144, %p145
    %p147 = scmp.ne.s32.totalorder %s133, %s134
    %p148 = scmp.eq.s32.totalorder %s21, 1
    %p149 = por %p147, %p148
    %p151 = scmp.ne.s32.totalorder %s134, %s150
    %p152 = scmp.eq.s32.totalorder %s21, 0
    %p153 = por %p151, %p152
    %s154 = ssub.s32 %s24, %s33
    %p155 = scmp.eq.s32.totalorder %s154, 0
    %s157 = sadd.s32 %s156, 1
    %s158 = scalar_select %p155, %s156, %s157
    %p161 = pneg %p155
    %p162 = scmp.eq.s32.totalorder %s15, 1
    %p163 = por %p161, %p162
    %p164 = scmp.ne.s32.totalorder %s156, %s159
    %p165 = scmp.eq.s32.totalorder %s15, 0
    %p166 = por %p164, %p165
    %p167 = scmp.ne.s32.totalorder %s156, %s159
    %p168 = scmp.eq.s32.totalorder %s20, 1
    %p169 = por %p167, %p168
    %p170 = scmp.ne.s32.totalorder %s159, %s160
    %p171 = scmp.eq.s32.totalorder %s20, 0
    %p172 = por %p170, %p171
    %p173 = scmp.ne.s32.totalorder %s159, %s160
    %p174 = scmp.eq.s32.totalorder %s21, 1
    %p175 = por %p173, %p174
    %p177 = scmp.ne.s32.totalorder %s160, %s176
    %p178 = scmp.eq.s32.totalorder %s21, 0
    %p179 = por %p177, %p178
    %s181 = sadd.s32 %s180, 1
    %p184 = scmp.eq.s32.totalorder %s15, 1
    %p185 = scmp.ne.s32.totalorder %s180, %s182
    %p186 = scmp.eq.s32.totalorder %s15, 0
    %p187 = por %p185, %p186
    %p188 = scmp.ne.s32.totalorder %s180, %s182
    %p189 = scmp.eq.s32.totalorder %s20, 1
    %p190 = por %p188, %p189
    %p191 = scmp.ne.s32.totalorder %s182, %s183
    %p192 = scmp.eq.s32.totalorder %s20, 0
    %p193 = por %p191, %p192
    %p194 = scmp.ne.s32.totalorder %s182, %s183
    %p195 = scmp.eq.s32.totalorder %s21, 1
    %p196 = por %p194, %p195
    %p198 = scmp.ne.s32.totalorder %s183, %s197
    %p199 = scmp.eq.s32.totalorder %s21, 0
    %p200 = por %p198, %p199
    %s202 = sadd.s32 %s201, 1
    %p205 = scmp.eq.s32.totalorder %s15, 1
    %p206 = scmp.ne.s32.totalorder %s201, %s203
    %p207 = scmp.eq.s32.totalorder %s15, 0
    %p208 = por %p206, %p207
    %p209 = scmp.ne.s32.totalorder %s201, %s203
    %p210 = scmp.eq.s32.totalorder %s20, 1
    %p211 = por %p209, %p210
    %p212 = scmp.ne.s32.totalorder %s203, %s204
    %p213 = scmp.eq.s32.totalorder %s20, 0
    %p214 = por %p212, %p213
    %p215 = scmp.ne.s32.totalorder %s203, %s204
    %p216 = scmp.eq.s32.totalorder %s21, 1
    %p217 = por %p215, %p216
    %p219 = scmp.ne.s32.totalorder %s204, %s218
    %p220 = scmp.eq.s32.totalorder %s21, 0
    %p221 = por %p219, %p220
    %s223 = sadd.s32 %s222, 1
    %p226 = scmp.eq.s32.totalorder %s15, 1
    %p227 = scmp.ne.s32.totalorder %s222, %s224
    %p228 = scmp.eq.s32.totalorder %s15, 0
    %p229 = por %p227, %p228
    %p230 = scmp.ne.s32.totalorder %s222, %s224
    %p231 = scmp.eq.s32.totalorder %s20, 1
    %p232 = por %p230, %p231
    %p233 = scmp.ne.s32.totalorder %s224, %s225
    %p234 = scmp.eq.s32.totalorder %s20, 0
    %p235 = por %p233, %p234
    %p236 = scmp.ne.s32.totalorder %s224, %s225
    %p237 = scmp.eq.s32.totalorder %s21, 1
    %p238 = por %p236, %p237
    %p240 = scmp.ne.s32.totalorder %s225, %s239
    %p241 = scmp.eq.s32.totalorder %s21, 0
    %p242 = por %p240, %p241
    %s243 = ssub.s32 %s22, %s41
    %s244 = ssub.s32 %s23, %s37
    %s245 = sor.u32 %s243, %s244
    %p246 = scmp.eq.s32.totalorder %s245, 0
    %s248 = sadd.s32 %s247, 1
    %s249 = scalar_select %p246, %s247, %s248
    %p252 = pneg %p246
    %p253 = scmp.eq.s32.totalorder %s15, 1
    %p254 = por %p252, %p253
    %p255 = scmp.ne.s32.totalorder %s247, %s250
    %p256 = scmp.eq.s32.totalorder %s15, 0
    %p257 = por %p255, %p256
    %p258 = scmp.ne.s32.totalorder %s247, %s250
    %p259 = scmp.eq.s32.totalorder %s20, 1
    %p260 = por %p258, %p259
    %p261 = scmp.ne.s32.totalorder %s250, %s251
    %p262 = scmp.eq.s32.totalorder %s20, 0
    %p263 = por %p261, %p262
    %p264 = scmp.ne.s32.totalorder %s250, %s251
    %p265 = scmp.eq.s32.totalorder %s21, 1
    %p266 = por %p264, %p265
    %p268 = scmp.ne.s32.totalorder %s251, %s267
    %p269 = scmp.eq.s32.totalorder %s21, 0
    %p270 = por %p268, %p269
    %p271 = scmp.le.s32.totalorder 1, %s15
    %p272 = scmp.lt.s32.totalorder %s15, 3
    %p273 = pnand %p271, %p272
    %p274 = pneg %p273
    // Predicated region
    $region9: #{attention_layer.1} parent=5 // pred_check
      _
    $region10: #{attention_layer.1} parent=5 // pred_check_branch
      %276 = sbr.rel (%p273) target = $region12
    $region11: #{attention_layer.1} parent=5 // pred_region
      %s277 = ssub.s32 %s15, 1
      // Predicated region
      $region13: #{attention_layer.1} parent=11 // pred_check
        %p278 = pneg %p172
      $region14: #{attention_layer.1} parent=11 // pred_check_branch
        %280 = sbr.rel (%p278) target = $region16
      $region15: #{attention_layer.1} parent=11 // pred_region
        %p281 = scmp.lt.s32.totalorder %s27, 0
        %s282 = scalar_select %p281, %s27, 0
        %s283 = scalar_lea.vmem %s4, %s282
      $region16: #{attention_layer.1} parent=11 // pred_fallthru
        _
      // Predicated region
      $region17: #{attention_layer.1} parent=11 // pred_check
        %p284 = pneg %p193
      $region18: #{attention_layer.1} parent=11 // pred_check_branch
        %286 = sbr.rel (%p284) target = $region20
      $region19: #{attention_layer.1} parent=11 // pred_region
        _
      $region20: #{attention_layer.1} parent=11 // pred_fallthru
        _
      // Predicated region
      $region21: #{attention_layer.1} parent=11 // pred_check
        %p287 = pneg %p214
      $region22: #{attention_layer.1} parent=11 // pred_check_branch
        %289 = sbr.rel (%p287) target = $region24
      $region23: #{attention_layer.1} parent=11 // pred_region
        _
      $region24: #{attention_layer.1} parent=11 // pred_fallthru
        _
      // Predicated region
      $region25: #{attention_layer.1} parent=11 // pred_check
        %p290 = pneg %p235
      $region26: #{attention_layer.1} parent=11 // pred_check_branch
        %292 = sbr.rel (%p290) target = $region28
      $region27: #{attention_layer.1} parent=11 // pred_region
        _
      $region28: #{attention_layer.1} parent=11 // pred_fallthru
        _
    $region12: #{attention_layer.1} parent=5 // pred_fallthru
      _
    %p293 = scmp.lt.s32.totalorder %s15, 2
    // Predicated region
    $region29: #{attention_layer.1} parent=5 // pred_check
      %p294 = pneg %p293
    $region30: #{attention_layer.1} parent=5 // pred_check_branch
      %296 = sbr.rel (%p294) target = $region32
    $region31: #{attention_layer.1} parent=5 // pred_region
      // Predicated region
      $region33: #{attention_layer.1} parent=31 // pred_check
        %p297 = pneg %p56
      $region34: #{attention_layer.1} parent=31 // pred_check_branch
        %299 = sbr.rel (%p297) target = $region36
      $region35: #{attention_layer.1} parent=31 // pred_region
        %p300 = scmp.lt.s32.totalorder %s22, 1
        %s301 = scalar_select %p300, %s22, 1
        %p302 = scmp.lt.s32.totalorder %s23, 0
        %s303 = scalar_select %p302, %s23, 0
        %s304 = smul.addr %s301, 4
        %s305 = sadd.s32 %s303, %s304
        %s306 = smul.addr %s305, 8
        %s307 = scalar_lea.vmem %s0, %s306
      $region36: #{attention_layer.1} parent=31 // pred_fallthru
        _
      // Predicated region
      $region37: #{attention_layer.1} parent=31 // pred_check
        %p308 = pneg %p84
      $region38: #{attention_layer.1} parent=31 // pred_check_branch
        %310 = sbr.rel (%p308) target = $region40
      $region39: #{attention_layer.1} parent=31 // pred_region
        %s311 = smul.u32 2, %s23
        %p312 = scmp.lt.s32.totalorder %s22, 1
        %s313 = scalar_select %p312, %s22, 1
        %p314 = scmp.lt.s32.totalorder %s311, 1
        %s315 = scalar_select %p314, %s311, 1
        %s316 = smul.addr %s313, 2
        %s317 = sadd.s32 %s315, %s316
        %s318 = smul.addr %s317, 4
        %s319 = scalar_lea.vmem %s1, %s318
        %s320 = smul.u32 2, %s23
      $region40: #{attention_layer.1} parent=31 // pred_fallthru
        _
      // Predicated region
      $region41: #{attention_layer.1} parent=31 // pred_check
        %p321 = pneg %p112
      $region42: #{attention_layer.1} parent=31 // pred_check_branch
        %323 = sbr.rel (%p321) target = $region44
      $region43: #{attention_layer.1} parent=31 // pred_region
        %p324 = scmp.lt.s32.totalorder %s22, 1
        %s325 = scalar_select %p324, %s22, 1
        %p326 = scmp.lt.s32.totalorder %s24, 0
        %s327 = scalar_select %p326, %s24, 0
        %s328 = sadd.s32 %s327, %s325
        %s329 = smul.addr %s328, 2
        %s330 = scalar_lea.vmem %s2, %s329
      $region44: #{attention_layer.1} parent=31 // pred_fallthru
        _
      // Predicated region
      $region45: #{attention_layer.1} parent=31 // pred_check
        %p331 = pneg %p140
      $region46: #{attention_layer.1} parent=31 // pred_check_branch
        %333 = sbr.rel (%p331) target = $region48
      $region47: #{attention_layer.1} parent=31 // pred_region
        %p334 = scmp.lt.s32.totalorder %s22, 1
        %s335 = scalar_select %p334, %s22, 1
        %p336 = scmp.lt.s32.totalorder %s24, 0
        %s337 = scalar_select %p336, %s24, 0
        %s338 = sadd.s32 %s337, %s335
        %s339 = smul.addr %s338, 2
        %s340 = scalar_lea.vmem %s3, %s339
      $region48: #{attention_layer.1} parent=31 // pred_fallthru
        _
    $region32: #{attention_layer.1} parent=5 // pred_fallthru
      _
    %p341 = scmp.le.s32.totalorder 1, %s15
    %p342 = scmp.lt.s32.totalorder %s15, 3
    %p343 = pnand %p341, %p342
    %p344 = pneg %p343
    // Predicated region
    $region49: #{attention_layer.1} parent=5 // pred_check
      _
    $region50: #{attention_layer.1} parent=5 // pred_check_branch
      %346 = sbr.rel (%p343) target = $region52
    $region51: #{attention_layer.1} parent=5 // pred_region
      %s347 = ssub.s32 %s15, 1
      %p348 = scmp.lt.s32.totalorder %s25, 1
      %s349 = scalar_select %p348, %s25, 1
      %p350 = scmp.lt.s32.totalorder %s26, 0
      %s351 = scalar_select %p350, %s26, 0
      %s352 = smul.addr %s349, 4
      %s353 = sadd.s32 %s351, %s352
      %s354 = smul.addr %s353, 8
      %s355 = scalar_lea.vmem %s0, %s354
      %p356 = pneg %p62
      %p357 = pneg %p59
      %s358 = smul.u32 2, %s26
      %p359 = scmp.lt.s32.totalorder %s25, 1
      %s360 = scalar_select %p359, %s25, 1
      %p361 = scmp.lt.s32.totalorder %s358, 1
      %s362 = scalar_select %p361, %s358, 1
      %s363 = smul.addr %s360, 2
      %s364 = sadd.s32 %s362, %s363
      %s365 = smul.addr %s364, 4
      %s366 = scalar_lea.vmem %s1, %s365
      %p367 = pneg %p90
      %p368 = pneg %p87
      %p369 = scmp.lt.s32.totalorder %s25, 1
      %s370 = scalar_select %p369, %s25, 1
      %p371 = scmp.lt.s32.totalorder %s27, 0
      %s372 = scalar_select %p371, %s27, 0
      %s373 = sadd.s32 %s372, %s370
      %s374 = smul.addr %s373, 2
      %s375 = scalar_lea.vmem %s2, %s374
      %p376 = pneg %p118
      %p377 = pneg %p115
      %p378 = scmp.lt.s32.totalorder %s25, 1
      %s379 = scalar_select %p378, %s25, 1
      %p380 = scmp.lt.s32.totalorder %s27, 0
      %s381 = scalar_select %p380, %s27, 0
      %s382 = sadd.s32 %s381, %s379
      %s383 = smul.addr %s382, 2
      %s384 = scalar_lea.vmem %s3, %s383
      %p385 = pneg %p146
      %p386 = pneg %p143
      %p387 = scmp.lt.s32.totalorder %s27, 0
      %s388 = scalar_select %p387, %s27, 0
      %s389 = scalar_lea.vmem %s4, %s388
      %p390 = pneg %p172
      %p391 = pneg %p169
      %p392 = pneg %p193
      %p393 = pneg %p190
      %p394 = pneg %p214
      %p395 = pneg %p211
      %p396 = pneg %p235
      %p397 = pneg %p232
      %p398 = pneg %p263
      %p399 = pneg %p260
      %p400 = scmp.lt.s32.totalorder %s25, 1
      %s401 = scalar_select %p400, %s25, 1
      %p402 = scmp.lt.s32.totalorder %s26, 0
      %s403 = scalar_select %p402, %s26, 0
      %s404 = smul.addr %s401, 4
      %s405 = sadd.s32 %s403, %s404
      %s406 = smul.addr %s405, 8
      %s407 = scalar_lea.vmem %s8, %s406
      %p408 = scmp.lt.s32.totalorder %s25, 1
      %s409 = scalar_select %p408, %s25, 1
      %p410 = scmp.lt.s32.totalorder %s26, 0
      %s411 = scalar_select %p410, %s26, 0
      %s412 = smul.addr %s409, 4
      %s413 = sadd.s32 %s411, %s412
      %s414 = smul.addr %s413, 8
      %s415 = scalar_lea.vmem %s0, %s414
      %s416 = smul.u32 2, %s26
      %p417 = scmp.lt.s32.totalorder %s25, 1
      %s418 = scalar_select %p417, %s25, 1
      %p419 = scmp.lt.s32.totalorder %s416, 1
      %s420 = scalar_select %p419, %s416, 1
      %s421 = smul.addr %s418, 2
      %s422 = sadd.s32 %s420, %s421
      %s423 = smul.addr %s422, 4
      %s424 = scalar_lea.vmem %s1, %s423
      %s425 = smul.u32 2, %s26
      %p426 = scmp.lt.s32.totalorder %s25, 1
      %s427 = scalar_select %p426, %s25, 1
      %p428 = scmp.lt.s32.totalorder %s27, 0
      %s429 = scalar_select %p428, %s27, 0
      %s430 = sadd.s32 %s429, %s427
      %s431 = smul.addr %s430, 2
      %s432 = scalar_lea.vmem %s2, %s431
      %p433 = scmp.lt.s32.totalorder %s25, 1
      %s434 = scalar_select %p433, %s25, 1
      %p435 = scmp.lt.s32.totalorder %s27, 0
      %s436 = scalar_select %p435, %s27, 0
      %s437 = sadd.s32 %s436, %s434
      %s438 = smul.addr %s437, 2
      %s439 = scalar_lea.vmem %s3, %s438
      %p440 = scmp.lt.s32.totalorder %s27, 0
      %s441 = scalar_select %p440, %s27, 0
      %s442 = scalar_lea.vmem %s4, %s441
      %p443 = scmp.lt.s32.totalorder %s25, 1
      %s444 = scalar_select %p443, %s25, 1
      %p445 = scmp.lt.s32.totalorder %s26, 0
      %s446 = scalar_select %p445, %s26, 0
      %s447 = smul.addr %s444, 4
      %s448 = sadd.s32 %s446, %s447
      %s449 = smul.addr %s448, 8
      %s450 = scalar_lea.vmem %s8, %s449
      %p452 = scmp.eq.s32.totalorder %s27, 0
      // Predicated region
      $region53: #{attention_layer.1} parent=51 // pred_check
        %p453 = pneg %p452
      $region54: #{attention_layer.1} parent=51 // pred_check_branch
        %455 = sbr.rel (%p453) target = $region56
      $region55: #{attention_layer.1} parent=51 // pred_region
        %vm456 = vcmask 7168
        %457 = vst.msk [vmem:[#allocation2] sm:$0xff] %vm456, -inf
        %458 = vst.msk [vmem:[#allocation2 + $0x8] sm:$0xff] %vm456, -inf
        %459 = vst.msk [vmem:[#allocation3] sm:$0xff] %vm456, 0.0
        %460 = vst.msk [vmem:[#allocation3 + $0x8] sm:$0xff] %vm456, 0.0
        %vm461 = vcmask 31744
        %462 = vst.msk [vmem:[#allocation4] sm:$0xff] %vm461, 0.0
        %463 = vst.msk [vmem:[#allocation4 + $0x8] sm:$0xff] %vm461, 0.0
      $region56: #{attention_layer.1} parent=51 // pred_fallthru
        _
      %v464 = vld [vmem:[%s424] sm:$0xf]
      %v465 = vld [vmem:[%s424 + $0x4] sm:$0xf]
      %v466 = vld [vmem:[%s432] sm:$0x3]
      %v467 = vld [vmem:[%s439] sm:$0x3]
      %v470 = vunpack.c.l.b16 %v464
      %v471 = vunpack.c.l.b16 %v465
      %v472 = vpack.c.b16 %v471, %v470
      %vm473 = vcmask 31744
      %v475 = vsel %vm473, %v472, 0
      %vm477 = vcmask 1041408
      %v479 = vsel %vm477, %v466, 0
      %481 = vmatprep.subr.bf16.mxu0 0
      %482 = vmatpush1.bf16.msra.mxu0 0
      %483 = vmatprep.subr.bf16.mxu0 0
      %484 = vmatpush1.bf16.msra.mxu0 0
      %485 = vmatprep.subr.bf16.mxu0 0
      %486 = vmatpush1.bf16.msra.mxu0 0
      %487 = vmatprep.subr.bf16.mxu0 0
      %488 = vmatpush1.bf16.msra.mxu0 0
      %489 = vmatprep.subr.bf16.mxu0 0
      %490 = vmatpush1.bf16.msra.mxu0 0
      %491 = vmatprep.subr.bf16.mxu0 0
      %492 = vmatpush1.bf16.msra.mxu0 0
      %493 = vmatprep.subr.bf16.mxu0 0
      %494 = vmatpush1.bf16.msra.mxu0 0
      %495 = vmatprep.subr.bf16.mxu0 0
      %496 = vmatpush1.bf16.msra.mxu0 %v479
      %497 = vmatprep.subr.bf16.mxu0 0
      %498 = vmatpush2.bf16.msra.mxu0 0
      %499 = vmatprep.subr.bf16.mxu0 0
      %500 = vmatpush2.bf16.msra.mxu0 0
      %501 = vmatprep.subr.bf16.mxu0 0
      %502 = vmatpush2.bf16.msra.mxu0 0
      %503 = vmatprep.subr.bf16.mxu0 0
      %504 = vmatpush2.bf16.msra.mxu0 0
      %505 = vmatprep.subr.bf16.mxu0 0
      %506 = vmatpush2.bf16.msra.mxu0 0
      %507 = vmatprep.subr.bf16.mxu0 0
      %508 = vmatpush2.bf16.msra.mxu0 0
      %509 = vmatprep.subr.bf16.mxu0 0
      %510 = vmatpush2.bf16.msra.mxu0 0
      %511 = vmatprep.subr.bf16.mxu0 0
      %512 = vmatpush2.bf16.msra.mxu0 0
      %513 = vmatprep.mubr.bf16.mxu0 0
      %514 = vmatmul.mubr.bf16.gmra.mxu0 %v475
      %v515 = vpop.f32.mrf.mxu0
      %v516 = vadd.f32 0.0, %v515
      %v517 = vpop.f32.mrf.mxu0
      %v518 = vpop.f32.mrf.mxu0
      %v519 = vadd.f32 0.0, %v518
      %v520 = vpop.f32.mrf.mxu0
      %521 = vdwg.mxu0
      %v522 = vld [vmem:[#allocation2] sm:$0xff]
      %v523 = vld [vmem:[#allocation2 + $0x8] sm:$0xff]
      %vm524 = vcmask 130048
      %v525 = vsel %vm524, %v516, -inf
      %526 = vmax.xlane.f32.xlu0 %v525
      %v527 = vpop.xlane.xlu0 %526
      %v528 = vsel %vm524, %v519, -inf
      %529 = vmax.xlane.f32.xlu0 %v528
      %v530 = vpop.xlane.xlu0 %529
      %v531 = vmax.f32 %v522, %v527
      %v532 = vmax.f32 %v523, %v530
      %v533 = vsub.f32 %v522, %v531
      %v534 = vsub.f32 %v523, %v532
      %v535 = vmul.f32 %v533, 1.442695
      %v536 = vpow.pop %v535
      %v537 = vmul.f32 %v534, 1.442695
      %v538 = vpow.pop %v537
      %540 = vset.pattern.permute.xlu0 0
      %541 = vperm.xlu0 %540, %v531
      %v542 = vpop.permute.xlu0 %541
      %545 = vset.pattern.permute.xlu0 0
      %546 = vperm.xlu0 %545, %v532
      %v547 = vpop.permute.xlu0 %546
      %v549 = vsub.f32 %v516, %v542
      %v550 = vsub.f32 %v519, %v547
      %v551 = vmul.f32 %v549, 1.442695
      %v552 = vpow.pop %v551
      %v553 = vmul.f32 %v550, 1.442695
      %v554 = vpow.pop %v553
      %v555 = vsel %vm524, %v552, 0.0
      %556 = vadd.xlane.f32.xlu0 %v555
      %v557 = vpop.xlane.xlu0 %556
      %v558 = vsel %vm524, %v554, 0.0
      %559 = vadd.xlane.f32.xlu0 %v558
      %v560 = vpop.xlane.xlu0 %559
      %v561 = vpack.c.bf16 %v554, %v552
      %v562 = vld [vmem:[#allocation3] sm:$0xff]
      %v563 = vld [vmem:[#allocation3 + $0x8] sm:$0xff]
      %v564 = vmul.f32 %v536, %v562
      %v565 = vmul.f32 %v538, %v563
      %v566 = vadd.f32 %v564, %v557
      %v567 = vadd.f32 %v565, %v560
      %vm568 = vcmask 7168
      %569 = vst.msk [vmem:[#allocation3] sm:$0xff] %vm568, %v566
      %570 = vst.msk [vmem:[#allocation3 + $0x8] sm:$0xff] %vm568, %v567
      %v571 = vld [vmem:[#allocation4] sm:$0xff]
      %v572 = vld [vmem:[#allocation4 + $0x8] sm:$0xff]
      %574 = vset.pattern.permute.xlu0 0
      %575 = vperm.xlu0 %574, %v536
      %v576 = vpop.permute.xlu0 %575
      %579 = vset.pattern.permute.xlu0 0
      %580 = vperm.xlu0 %579, %v538
      %v581 = vpop.permute.xlu0 %580
      %v583 = vmul.f32 %v576, %v571
      %v584 = vmul.f32 %v581, %v572
      %v586 = vsel %vm524, %v561, 0
      %v589 = vsel %vm524, %v467, 0
      %591 = vmatprep.subr.bf16.mxu0 0
      %592 = vmatpush1.bf16.xpose.msra.mxu0 0
      %593 = vmatprep.subr.bf16.mxu0 0
      %594 = vmatpush1.bf16.xpose.msra.mxu0 0
      %595 = vmatprep.subr.bf16.mxu0 0
      %596 = vmatpush1.bf16.xpose.msra.mxu0 0
      %597 = vmatprep.subr.bf16.mxu0 0
      %598 = vmatpush1.bf16.xpose.msra.mxu0 0
      %599 = vmatprep.subr.bf16.mxu0 0
      %600 = vmatpush1.bf16.xpose.msra.mxu0 0
      %601 = vmatprep.subr.bf16.mxu0 0
      %602 = vmatpush1.bf16.xpose.msra.mxu0 0
      %603 = vmatprep.subr.bf16.mxu0 0
      %604 = vmatpush1.bf16.xpose.msra.mxu0 0
      %605 = vmatprep.subr.bf16.mxu0 0
      %606 = vmatpush1.bf16.xpose.msra.mxu0 %v589
      %607 = vmatprep.subr.bf16.mxu0 0
      %608 = vmatpush2.bf16.xpose.msra.mxu0 0
      %609 = vmatprep.subr.bf16.mxu0 0
      %610 = vmatpush2.bf16.xpose.msra.mxu0 0
      %611 = vmatprep.subr.bf16.mxu0 0
      %612 = vmatpush2.bf16.xpose.msra.mxu0 0
      %613 = vmatprep.subr.bf16.mxu0 0
      %614 = vmatpush2.bf16.xpose.msra.mxu0 0
      %615 = vmatprep.subr.bf16.mxu0 0
      %616 = vmatpush2.bf16.xpose.msra.mxu0 0
      %617 = vmatprep.subr.bf16.mxu0 0
      %618 = vmatpush2.bf16.xpose.msra.mxu0 0
      %619 = vmatprep.subr.bf16.mxu0 0
      %620 = vmatpush2.bf16.xpose.msra.mxu0 0
      %621 = vmatprep.subr.bf16.mxu0 0
      %622 = vmatpush2.bf16.xpose.msra.mxu0 0
      %623 = vmatprep.mubr.bf16.mxu0 0
      %624 = vmatmul.mubr.bf16.gmra.mxu0 %v586
      %v625 = vpop.f32.mrf.mxu0
      %v626 = vadd.f32 0.0, %v625
      %v627 = vpop.f32.mrf.mxu0
      %v628 = vpop.f32.mrf.mxu0
      %v629 = vadd.f32 0.0, %v628
      %v630 = vpop.f32.mrf.mxu0
      %631 = vdwg.mxu0
      %v632 = vadd.f32 %v583, %v626
      %v633 = vadd.f32 %v584, %v629
      %634 = vst.msk [vmem:[#allocation4] sm:$0xff] %vm473, %v632
      %635 = vst.msk [vmem:[#allocation4 + $0x8] sm:$0xff] %vm473, %v633
      %636 = vst.msk [vmem:[#allocation2] sm:$0xff] %vm568, %v531
      %637 = vst.msk [vmem:[#allocation2 + $0x8] sm:$0xff] %vm568, %v532
      // Predicated region
      $region57: #{attention_layer.1} parent=51 // pred_check
        %p638 = pneg %p452
      $region58: #{attention_layer.1} parent=51 // pred_check_branch
        %640 = sbr.rel (%p638) target = $region60
      $region59: #{attention_layer.1} parent=51 // pred_region
        %v641 = vld [vmem:[#allocation4] sm:$0xff]
        %v642 = vld [vmem:[#allocation4 + $0x8] sm:$0xff]
        %v643 = vld [vmem:[#allocation3] sm:$0xff]
        %v644 = vld [vmem:[#allocation3 + $0x8] sm:$0xff]
        %v645 = vrcp.pop %v643
        %v646 = vrcp.pop %v644
        %648 = vset.pattern.permute.xlu0 0
        %649 = vperm.xlu0 %648, %v645
        %v650 = vpop.permute.xlu0 %649
        %653 = vset.pattern.permute.xlu0 0
        %654 = vperm.xlu0 %653, %v646
        %v655 = vpop.permute.xlu0 %654
        %v657 = vmul.f32 %v641, %v650
        %v658 = vmul.f32 %v642, %v655
        %v659 = vld [vmem:[%s5] sm:$0xf]
        %v660 = vld [vmem:[%s5 + $0x4] sm:$0xf]
        %v661 = vld [vmem:[%s5 + $0x8] sm:$0xf]
        %v662 = vld [vmem:[%s5 + $0xc] sm:$0xf]
        %v663 = vpack.c.bf16 %v658, %v657
        %v664 = vld [vmem:[%s6] sm:$0xff]
        %v665 = vld [vmem:[%s6 + $0x8] sm:$0xff]
        %v666 = vld [vmem:[%s6 + $0x10] sm:$0xff]
        %v667 = vld [vmem:[%s6 + $0x18] sm:$0xff]
        %669 = vset.pattern.permute.xlu0 0
        %670 = vperm.xlu0 %669, %v664
        %v671 = vpop.permute.xlu0 %670
        %674 = vset.pattern.permute.xlu0 0
        %675 = vperm.xlu0 %674, %v665
        %v676 = vpop.permute.xlu0 %675
        %679 = vset.pattern.permute.xlu0 0
        %680 = vperm.xlu0 %679, %v666
        %v681 = vpop.permute.xlu0 %680
        %684 = vset.pattern.permute.xlu0 0
        %685 = vperm.xlu0 %684, %v667
        %v686 = vpop.permute.xlu0 %685
        %v692 = vunpack.c.l.b16 %v659
        %v693 = vunpack.c.l.b16 %v660
        %v694 = vunpack.c.l.b16 %v661
        %v695 = vunpack.c.l.b16 %v662
        %v696 = vpack.c.b16 %v693, %v692
        %v697 = vpack.c.b16 %v695, %v694
        %v699 = vsel %vm473, %v696, 0
        %v702 = vsel %vm473, %v697, 0
        %v705 = vsel %vm473, %v663, 0
        %707 = vmatprep.subr.bf16.mxu0 0
        %708 = vmatpush1.bf16.xpose.msra.mxu0 0
        %709 = vmatprep.subr.bf16.mxu0 0
        %710 = vmatpush1.bf16.xpose.msra.mxu0 0
        %711 = vmatprep.subr.bf16.mxu0 0
        %712 = vmatpush1.bf16.xpose.msra.mxu0 0
        %713 = vmatprep.subr.bf16.mxu0 0
        %714 = vmatpush1.bf16.xpose.msra.mxu0 0
        %715 = vmatprep.subr.bf16.mxu0 0
        %716 = vmatpush1.bf16.xpose.msra.mxu0 0
        %717 = vmatprep.subr.bf16.mxu0 0
        %718 = vmatpush1.bf16.xpose.msra.mxu0 0
        %719 = vmatprep.subr.bf16.mxu0 0
        %720 = vmatpush1.bf16.xpose.msra.mxu0 0
        %721 = vmatprep.subr.bf16.mxu0 0
        %722 = vmatpush1.bf16.xpose.msra.mxu0 %v705
        %723 = vmatprep.subr.bf16.mxu0 0
        %724 = vmatpush2.bf16.xpose.msra.mxu0 0
        %725 = vmatprep.subr.bf16.mxu0 0
        %726 = vmatpush2.bf16.xpose.msra.mxu0 0
        %727 = vmatprep.subr.bf16.mxu0 0
        %728 = vmatpush2.bf16.xpose.msra.mxu0 0
        %729 = vmatprep.subr.bf16.mxu0 0
        %730 = vmatpush2.bf16.xpose.msra.mxu0 0
        %731 = vmatprep.subr.bf16.mxu0 0
        %732 = vmatpush2.bf16.xpose.msra.mxu0 0
        %733 = vmatprep.subr.bf16.mxu0 0
        %734 = vmatpush2.bf16.xpose.msra.mxu0 0
        %735 = vmatprep.subr.bf16.mxu0 0
        %736 = vmatpush2.bf16.xpose.msra.mxu0 0
        %737 = vmatprep.subr.bf16.mxu0 0
        %738 = vmatpush2.bf16.xpose.msra.mxu0 0
        %739 = vmatprep.mubr.bf16.mxu0 0
        %740 = vmatmul.mubr.bf16.gmra.mxu0 %v699
        %v741 = vpop.f32.mrf.mxu0
        %v742 = vadd.f32 %v671, %v741
        %v743 = vpop.f32.mrf.mxu0
        %v744 = vpop.f32.mrf.mxu0
        %v745 = vadd.f32 %v676, %v744
        %v746 = vpop.f32.mrf.mxu0
        %747 = vmatprep.mubr.bf16.mxu0 0
        %748 = vmatmul.mubr.bf16.gmra.mxu0 %v702
        %v749 = vpop.f32.mrf.mxu0
        %v750 = vadd.f32 %v681, %v749
        %v751 = vpop.f32.mrf.mxu0
        %v752 = vpop.f32.mrf.mxu0
        %v753 = vadd.f32 %v686, %v752
        %v754 = vpop.f32.mrf.mxu0
        %755 = vdwg.mxu0
        %s756 = sld [smem:[#allocation5]]
        %v757 = vstv %s756
        %v758 = vmul.f32 %v757, %v742
        %v759 = vmul.f32 %v757, %v745
        %v760 = vmul.f32 %v757, %v750
        %v761 = vmul.f32 %v757, %v753
        %v762 = vld [vmem:[%s415] sm:$0xff]
        %v763 = vld [vmem:[%s415 + $0x8] sm:$0xff]
        %v764 = vld [vmem:[%s415 + $0x10] sm:$0xff]
        %v765 = vld [vmem:[%s415 + $0x18] sm:$0xff]
        %v766 = vadd.f32 %v758, %v762
        %v767 = vadd.f32 %v759, %v763
        %v768 = vadd.f32 %v760, %v764
        %v769 = vadd.f32 %v761, %v765
        %770 = vst.msk [vmem:[%s450] sm:$0xff] %vm524, %v766
        %771 = vst.msk [vmem:[%s450 + $0x8] sm:$0xff] %vm524, %v767
        %772 = vst.msk [vmem:[%s450 + $0x10] sm:$0xff] %vm524, %v768
        %773 = vst.msk [vmem:[%s450 + $0x18] sm:$0xff] %vm524, %v769
      $region60: #{attention_layer.1} parent=51 // pred_fallthru
        _
      %p774 = scmp.lt.s32.totalorder %s25, 1
      %s775 = scalar_select %p774, %s25, 1
      %p776 = scmp.lt.s32.totalorder %s26, 0
      %s777 = scalar_select %p776, %s26, 0
      %s778 = smul.addr %s775, 4
      %s779 = sadd.s32 %s777, %s778
      %s780 = smul.addr %s779, 8
      %s781 = scalar_lea.vmem %s8, %s780
      // Predicated region
      $region61: #{attention_layer.1} parent=51 // pred_check
        %p782 = pneg %p260
      $region62: #{attention_layer.1} parent=51 // pred_check_branch
        %784 = sbr.rel (%p782) target = $region64
      $region63: #{attention_layer.1} parent=51 // pred_region
        _
      $region64: #{attention_layer.1} parent=51 // pred_fallthru
        _
    $region52: #{attention_layer.1} parent=5 // pred_fallthru
      _
    %p785 = scmp.le.s32.totalorder 2, %s15
    // Predicated region
    $region65: #{attention_layer.1} parent=5 // pred_check
      %p786 = pneg %p785
    $region66: #{attention_layer.1} parent=5 // pred_check_branch
      %788 = sbr.rel (%p786) target = $region68
    $region67: #{attention_layer.1} parent=5 // pred_region
      %s789 = ssub.s32 %s15, 2
      // Predicated region
      $region69: #{attention_layer.1} parent=67 // pred_check
        %p790 = pneg %p266
      $region70: #{attention_layer.1} parent=67 // pred_check_branch
        %792 = sbr.rel (%p790) target = $region72
      $region71: #{attention_layer.1} parent=67 // pred_region
        %p793 = scmp.lt.s32.totalorder %s28, 1
        %s794 = scalar_select %p793, %s28, 1
        %p795 = scmp.lt.s32.totalorder %s29, 0
        %s796 = scalar_select %p795, %s29, 0
        %s797 = smul.addr %s794, 4
        %s798 = sadd.s32 %s796, %s797
        %s799 = smul.addr %s798, 8
        %s800 = scalar_lea.vmem %s8, %s799
      $region72: #{attention_layer.1} parent=67 // pred_fallthru
        _
    $region68: #{attention_layer.1} parent=5 // pred_fallthru
      _
  $region6: #{attention_layer.1} parent=0 // loop_footer
    %s19 = sadd.s32 1, %s15
  $region7: #{attention_layer.1} parent=0 // loop_footer_branch
    %14 = sbr.rel target = $region3
  $region8: #{attention_layer.1} parent=0 // loop_exit
    _

</llo_original>
